<compile_context>
chip_gen: v6e
topology: v6e:2x2x1
jax: 0.10.0
libtpu: 0.0.40
codegen_flags: <defaults>
</compile_context>

<pallas_src>
import functools

import jax
import jax.numpy as jnp
import numpy as np
from jax.experimental import pallas as pl
from jax.experimental.pallas import tpu as pltpu


_TM = 256                      # row tile (multiple of 8)
_TN = 512                      # col tile (multiple of 128, lane-dense)
_SMALL_D_MAX = 4               # D <= this -> VPU expansion; else MXU path
_MEDIAN_SAMPLE_TARGET = 1 << 16   # ~64K pairs for the bandwidth heuristic


def _round_up(x, mult):
    return ((x + mult - 1) // mult) * mult


# ---------------------------------------------------------------------------
# Fused tile kernels: K[i, j] = exp(-gamma * ||x_i - y_j||^2) per (i, j) block.
# Y arrives pre-transposed as (D, M) so both paths read lane-dense tiles.
# ---------------------------------------------------------------------------
def _rbf_tile_kernel_vpu(gamma_ref, x_ref, yt_ref, k_ref, *, feat_dim):
    x = x_ref[...]                                        # (tm, D) f32
    yt = yt_ref[...]                                      # (D, tn) f32
    # Small-D path: pure VPU broadcast expansion, D loop unrolled.
    diff = x[:, 0:1] - yt[0:1, :]
    d2 = diff * diff
    for k in range(1, feat_dim):
        diff = x[:, k:k + 1] - yt[k:k + 1, :]
        d2 = d2 + diff * diff
    gamma = gamma_ref[0, 0]                               # SMEM scalar
    k_ref[...] = jnp.exp(-gamma * d2)


def _rbf_tile_kernel_mxu(gamma_ref, x_ref, yt_ref, ysq_ref, k_ref):
    x = x_ref[...]                                        # (tm, D) f32
    yt = yt_ref[...]                                      # (D, tn) f32
    # Standard contraction (no in-kernel transpose): (tm, D) x (D, tn).
    xy = jax.lax.dot_general(
        x, yt, dimension_numbers=(((1,), (0,)), ((), ())),
        preferred_element_type=jnp.float32)               # (tm, tn)
    # ||x||^2 from the already-resident X tile — no extra (tm, 1) DMA; the
    # lane reduce rides an otherwise-idle slot while MXU/stores dominate.
    x_sq = jnp.sum(x * x, axis=1, keepdims=True)          # (tm, 1)
    # Clamp tiny negative cancellation noise.
    d2 = jnp.maximum(x_sq + ysq_ref[...] - 2.0 * xy, 0.0)
    gamma = gamma_ref[0, 0]                               # SMEM scalar
    k_ref[...] = jnp.exp(-gamma * d2)


def rbf_pairwise(x, y, gamma):
    """exp(-gamma * ||x_i - y_j||^2), fused distance + exp in one pass."""
    x = jnp.asarray(x, jnp.float32)
    y = jnp.asarray(y, jnp.float32)
    n, d = x.shape
    m = y.shape[0]
    use_mxu = d > _SMALL_D_MAX

    # Lane-dense output stores: pad M to a multiple of 128 (masked vst.msk
    # partial stores are the biggest measured mem-bound lever), slice after.
    m_pad = m if m <= 128 else _round_up(m, 128)
    if m_pad != m:
        y = jnp.pad(y, ((0, m_pad - m), (0, 0)))

    # Tile sizes: full extent when small, otherwise aligned preferred tiles
    # (Pallas masks the ragged edge blocks).
    tm = n if n <= _TM else _TM
    tn = m_pad if m_pad <= _TN else _TN
    # v7x megacore: keep >= 2 grid blocks on a "parallel" axis for mid-size
    # problems so both TensorCores get work (harmless on v5e/v6e, 1 TC).
    if pl.cdiv(n, tm) * pl.cdiv(m_pad, tn) == 1 and n * m_pad >= (1 << 15):
        if m_pad >= 256:
            tn = _round_up(m_pad // 2, 128)
        elif n >= 16:
            tm = _round_up(-(-n // 2), 8)
    grid = (pl.cdiv(n, tm), pl.cdiv(m_pad, tn))

    gamma_arr = jnp.reshape(jnp.asarray(gamma, jnp.float32), (1, 1))
    y_t = y.T                                             # (D, M) — once

    in_specs = [
        pl.BlockSpec(memory_space=pltpu.MemorySpace.SMEM),       # gamma
        pl.BlockSpec((tm, d), lambda i, j: (i, 0)),              # X tile
        pl.BlockSpec((d, tn), lambda i, j: (0, j)),              # Y^T tile
    ]
    if use_mxu:
        # TODO(synk): for very large D the MXU path should add a K-grid
        # ("arbitrary") axis with a VMEM accumulator; here D fits one tile.
        y_sq = jnp.sum(y * y, axis=1)[None, :]                   # (1, M)
        in_specs.append(pl.BlockSpec((1, tn), lambda i, j: (0, j)))
        args = (gamma_arr, x, y_t, y_sq)
        kernel = _rbf_tile_kernel_mxu
    else:
        args = (gamma_arr, x, y_t)
        kernel = functools.partial(_rbf_tile_kernel_vpu, feat_dim=d)

    out = pl.pallas_call(
        kernel,
        out_shape=jax.ShapeDtypeStruct((n, m_pad), jnp.float32),
        grid=grid,
        in_specs=in_specs,
        out_specs=pl.BlockSpec((tm, tn), lambda i, j: (i, j)),
        compiler_params=pltpu.CompilerParams(
            dimension_semantics=("parallel", "parallel"),
            vmem_limit_bytes=32 * 1024 * 1024,
        ),
    )(*args)
    return out[:, :m] if m_pad != m else out


# ---------------------------------------------------------------------------
# Median bandwidth heuristic (plain JAX) — never materializes the full (N, M)
# distance matrix; subsamples rows of X and Y down to ~64K pairs when large.
# ---------------------------------------------------------------------------
def _median_bandwidth(X, Y):
    n, m = X.shape[0], Y.shape[0]
    total = n * m
    if total > _MEDIAN_SAMPLE_TARGET:
        # TODO(synk): deterministic stride sampling can alias with structured
        # inputs; a randomized row sample would be more robust.
        stride = int(np.ceil(np.sqrt(total / _MEDIAN_SAMPLE_TARGET)))
        Xs, Ys = X[::stride], Y[::stride]
    else:
        Xs, Ys = X, Y
    d2 = (jnp.sum(Xs * Xs, axis=1)[:, None]
          + jnp.sum(Ys * Ys, axis=1)[None, :]
          - 2.0 * (Xs @ Ys.T))
    h = jnp.median(d2) / (2.0 * jnp.log(n + 1.0))
    return jnp.sqrt(h)


# ---------------------------------------------------------------------------
# Module wrapper — mirrors torch RBF.forward semantics
# ---------------------------------------------------------------------------
class RBF:
    def __init__(self, sigma=None):
        self.sigma = sigma

    def __call__(self, X, Y, scale):
        X = jnp.asarray(X, jnp.float32)
        Y = jnp.asarray(Y, jnp.float32)
        scale = jnp.asarray(scale, jnp.float32)

        if self.sigma is None:
            sigma = _median_bandwidth(X, Y)
        else:
            sigma = jnp.asarray(self.sigma, jnp.float32)

        sigma = sigma * scale
        gamma = 1.0 / (1e-08 + 2.0 * sigma ** 2)

        # Single fused distance + exp pass: the only (N, M)-sized HBM traffic.
        return rbf_pairwise(X, Y, gamma)


# ---------------------------------------------------------------------------
# Pure-JAX reference for the correctness check
# ---------------------------------------------------------------------------
def _rbf_ref(X, Y, scale, sigma=None):
    X = jnp.asarray(X, jnp.float32)
    Y = jnp.asarray(Y, jnp.float32)
    XX = X @ X.T
    YY = Y @ Y.T
    XY = X @ Y.T
    dnorm2 = jnp.diag(XX)[:, None] + jnp.diag(YY)[None, :] - 2.0 * XY
    if sigma is None:
        h = jnp.median(dnorm2) / (2.0 * jnp.log(X.shape[0] + 1.0))
        sigma = jnp.sqrt(h)
    sigma = jnp.asarray(sigma, jnp.float32) * scale
    gamma = 1.0 / (1e-08 + 2.0 * sigma ** 2)
    return jnp.exp(-gamma * dnorm2)


if __name__ == "__main__":
    key = jax.random.PRNGKey(0)
    kx, ky, kx2, ky2, kx3, ky3 = jax.random.split(key, 6)

    # Module spec: n = 50 particles in 2-D (X_init = 5 * randn(n, 2)).
    n, d = 50, 2
    X = 5.0 * jax.random.normal(kx, (n, d), dtype=jnp.float32)
    Y = X + 0.1 * jax.random.normal(ky, (n, d), dtype=jnp.float32)
    scale = jnp.float32(1.0)

    K = RBF(sigma=None)(X, Y, scale)          # median path, small-D VPU kernel
    K = jax.block_until_ready(K)
    K_ref = _rbf_ref(X, Y, scale, sigma=None)
    assert K.shape == (n, n)
    assert np.allclose(np.asarray(K), np.asarray(K_ref), rtol=5e-4, atol=1e-5)

    # Secondary check: larger feature dim exercises the MXU tile path and the
    # fixed-sigma fused path.
    n2, m2, d2 = 72, 48, 64
    X2 = jax.random.normal(kx2, (n2, d2), dtype=jnp.float32)
    Y2 = jax.random.normal(ky2, (m2, d2), dtype=jnp.float32)
    K2 = RBF(sigma=2.5)(X2, Y2, jnp.float32(2.0))
    K2 = jax.block_until_ready(K2)
    K2_ref = _rbf_ref(X2, Y2, jnp.float32(2.0), sigma=2.5)
    assert K2.shape == (n2, m2)
    assert np.allclose(np.asarray(K2), np.asarray(K2_ref), rtol=5e-4, atol=1e-5)

    # Third check: ragged M (128 < M, M % 128 != 0) exercises the pad-to-128
    # lane-dense store path and the post-slice.
    n3, m3, d3 = 40, 200, 2
    X3 = jax.random.normal(kx3, (n3, d3), dtype=jnp.float32)
    Y3 = jax.random.normal(ky3, (m3, d3), dtype=jnp.float32)
    K3 = RBF(sigma=1.3)(X3, Y3, jnp.float32(1.0))
    K3 = jax.block_until_ready(K3)
    K3_ref = _rbf_ref(X3, Y3, jnp.float32(1.0), sigma=1.3)
    assert K3.shape == (n3, m3)
    assert np.allclose(np.asarray(K3), np.asarray(K3_ref), rtol=5e-4, atol=1e-5)

    print("KERNEL_OK")
</pallas_src>

<mosaic_0001>
module attributes {stable_mosaic.version = 11 : i64} {
  func.func @_rbf_tile_kernel_vpu(%arg0: i32, %arg1: i32, %arg2: memref<1x1xf32, #tpu.memory_space<smem>>, %arg3: memref<50x2xf32, #tpu.memory_space<vmem>>, %arg4: memref<2x50xf32, #tpu.memory_space<vmem>>, %arg5: memref<50x50xf32, #tpu.memory_space<vmem>>) attributes {dimension_semantics = [#tpu.dimension_semantics<parallel>, #tpu.dimension_semantics<parallel>], iteration_bounds = array<i64: 1, 1>, scalar_prefetch = 0 : i64, scratch_operands = 0 : i64, tpu.core_type = #tpu.core_type<tc>, window_params = [{transform_indices = @transform_0, window_bounds = array<i64: 1, 1>}, {transform_indices = @transform_1, window_bounds = array<i64: 50, 2>}, {transform_indices = @transform_2, window_bounds = array<i64: 2, 50>}, {transform_indices = @transform_3, window_bounds = array<i64: 50, 50>}]} {
    %c0 = arith.constant 0 : index
    %c0_0 = arith.constant 0 : index
    %0 = vector.load %arg3[%c0, %c0_0] : memref<50x2xf32, #tpu.memory_space<vmem>>, vector<50x2xf32>
    %c0_1 = arith.constant 0 : index
    %c0_2 = arith.constant 0 : index
    %1 = vector.load %arg4[%c0_1, %c0_2] : memref<2x50xf32, #tpu.memory_space<vmem>>, vector<2x50xf32>
    %2 = vector.extract_strided_slice %0 {offsets = [0, 0], sizes = [50, 1], strides = [1, 1]} : vector<50x2xf32> to vector<50x1xf32>
    %3 = vector.extract_strided_slice %1 {offsets = [0, 0], sizes = [1, 50], strides = [1, 1]} : vector<2x50xf32> to vector<1x50xf32>
    %4 = vector.broadcast %2 : vector<50x1xf32> to vector<50x50xf32>
    %5 = vector.broadcast %3 : vector<1x50xf32> to vector<50x50xf32>
    %6 = arith.subf %4, %5 : vector<50x50xf32>
    %7 = arith.mulf %6, %6 : vector<50x50xf32>
    %8 = vector.extract_strided_slice %0 {offsets = [0, 1], sizes = [50, 1], strides = [1, 1]} : vector<50x2xf32> to vector<50x1xf32>
    %9 = vector.extract_strided_slice %1 {offsets = [1, 0], sizes = [1, 50], strides = [1, 1]} : vector<2x50xf32> to vector<1x50xf32>
    %10 = vector.broadcast %8 : vector<50x1xf32> to vector<50x50xf32>
    %11 = vector.broadcast %9 : vector<1x50xf32> to vector<50x50xf32>
    %12 = arith.subf %10, %11 : vector<50x50xf32>
    %13 = arith.mulf %12, %12 : vector<50x50xf32>
    %14 = arith.addf %7, %13 : vector<50x50xf32>
    %c0_3 = arith.constant 0 : index
    %c0_4 = arith.constant 0 : index
    %15 = memref.load %arg2[%c0_3, %c0_4] : memref<1x1xf32, #tpu.memory_space<smem>>
    %cst = arith.constant 0.000000e+00 : f32
    %16 = arith.subf %cst, %15 : f32
    %17 = vector.broadcast %16 : f32 to vector<50x50xf32>
    %18 = arith.mulf %17, %14 : vector<50x50xf32>
    %19 = math.exp %18 : vector<50x50xf32>
    %c0_5 = arith.constant 0 : index
    %c0_6 = arith.constant 0 : index
    %20 = vector.load %arg5[%c0_5, %c0_6] : memref<50x50xf32, #tpu.memory_space<vmem>>, vector<50x50xf32>
    tpu.vector_store %arg5[%c0_5, %c0_6], %19 {strides = array<i32>} : memref<50x50xf32, #tpu.memory_space<vmem>>, vector<50x50xf32>,
    return
  }
  func.func @transform_0(%arg0: i32, %arg1: i32) -> (i32, i32) {
    %c0_i32 = arith.constant 0 : i32
    %c0_i32_0 = arith.constant 0 : i32
    %c0_i32_1 = arith.constant 0 : i32
    return %c0_i32, %c0_i32_0 : i32, i32
  }
  func.func @transform_1(%arg0: i32, %arg1: i32) -> (i32, i32) {
    %c0_i32 = arith.constant 0 : i32
    %c0_i32_0 = arith.constant 0 : i32
    return %arg0, %c0_i32 : i32, i32
  }
  func.func @transform_2(%arg0: i32, %arg1: i32) -> (i32, i32) {
    %c0_i32 = arith.constant 0 : i32
    %c0_i32_0 = arith.constant 0 : i32
    return %c0_i32, %arg1 : i32, i32
  }
  func.func @transform_3(%arg0: i32, %arg1: i32) -> (i32, i32) {
    %c0_i32 = arith.constant 0 : i32
    return %arg0, %arg1 : i32, i32
  }
}

</mosaic_0001>

<llo_original>
// kernel: tpu_custom_call.1
$region0: #{tpu_custom_call.1}
  #allocation0 [shape = 'u32[]', space=smem, size = 0x4, offset = 0x4, fixed_abs, tag = 'smem constant byte address 0x4 - core index']
  #allocation1 [shape = 'u32[144,128]{1,0:T(1,128)}', space=vmem, size = 0x12000, scoped, tag = 'internal scratch']
  #allocation2 [shape = 'f32[1,1]{1,0:T(1,128)S(6)}', space=smem, size = 0x200, scoped, tag = 'scoped memory for tpu_custom_call.1']
  %s0 = inlined_call_operand.<no memory space> [shape: f32[1,1], index: 0, kind: input, shape index: {}]
  %s1 = inlined_call_operand.vmem [shape: f32[50,2], index: 1, kind: input, shape index: {}]
  %s2 = inlined_call_operand.vmem [shape: f32[2,50], index: 2, kind: input, shape index: {}]
  %s3 = inlined_call_operand.hbm [shape: f32[50,50], index: 3, kind: output, shape index: {}]
  %s4 = sld [smem:[#allocation0]]
  $region22: #{tpu_custom_call.1} parent=0
    _
  %s6 = ssub.s32 1, %s4
  %s7 = scalar_select 0, %s6, %s4
  %8 = sst [smem:[#allocation2]] %s0
  $region1: #{tpu_custom_call.1} parent=0
    #allocation3 [shape = 'u8[28672]{0}', space=vmem, size = 0x7000, scoped, tag = 'output window, operand 0, single buffered']
    #allocation4 [shape = 's32[1]{0}', space=sflag, size = 0x4, scoped, tag = 'scoped memory for tpu_custom_call.1']
    %9 = vsyncpa [#allocation4], 0
    // Predicated region
    $region2: #{tpu_custom_call.1} parent=1 // pred_check
      _
    $region3: #{tpu_custom_call.1} parent=1 // pred_check_branch
      %11 = sbr.rel (0) target = $region5
    $region4: #{tpu_custom_call.1} parent=1 // pred_region
      _
    $region5: #{tpu_custom_call.1} parent=1 // pred_fallthru
      _
    // Predicated region
    $region6: #{tpu_custom_call.1} parent=1 // pred_check
      _
    $region7: #{tpu_custom_call.1} parent=1 // pred_check_branch
      %13 = sbr.rel (0) target = $region9
    $region8: #{tpu_custom_call.1} parent=1 // pred_region
      _
    $region9: #{tpu_custom_call.1} parent=1 // pred_fallthru
      _
    // Predicated region
    $region10: #{tpu_custom_call.1} parent=1 // pred_check
      _
    $region11: #{tpu_custom_call.1} parent=1 // pred_check_branch
      %15 = sbr.rel (0) target = $region13
    $region12: #{tpu_custom_call.1} parent=1 // pred_region
      _
    $region13: #{tpu_custom_call.1} parent=1 // pred_fallthru
      _
    %v16 = vld [vmem:[%s1] sm:$0xff]
    %v17 = vld [vmem:[%s1 + $0x8] sm:$0xff]
    %v18 = vld [vmem:[%s1 + $0x10] sm:$0xff]
    %v19 = vld [vmem:[%s1 + $0x18] sm:$0xff]
    %v20 = vld [vmem:[%s1 + $0x20] sm:$0xff]
    %v21 = vld [vmem:[%s1 + $0x28] sm:$0xff]
    %v22 = vld [vmem:[%s1 + $0x30] sm:$0x3]
    %v23 = vld [vmem:[%s2] sm:$0x3]
    %25 = vset.pattern.permute.xlu0 0
    %26 = vperm.xlu0 %25, %v16
    %v27 = vpop.permute.xlu0 %26
    %30 = vset.pattern.permute.xlu0 0
    %31 = vperm.xlu0 %30, %v17
    %v32 = vpop.permute.xlu0 %31
    %35 = vset.pattern.permute.xlu0 0
    %36 = vperm.xlu0 %35, %v18
    %v37 = vpop.permute.xlu0 %36
    %40 = vset.pattern.permute.xlu0 0
    %41 = vperm.xlu0 %40, %v19
    %v42 = vpop.permute.xlu0 %41
    %45 = vset.pattern.permute.xlu0 0
    %46 = vperm.xlu0 %45, %v20
    %v47 = vpop.permute.xlu0 %46
    %50 = vset.pattern.permute.xlu0 0
    %51 = vperm.xlu0 %50, %v21
    %v52 = vpop.permute.xlu0 %51
    %55 = vset.pattern.permute.xlu0 0
    %56 = vperm.xlu0 %55, %v22
    %v57 = vpop.permute.xlu0 %56
    %v59 = vlaneseq
    %v60 = vshrl.u32 %v59, 7
    %v61 = vsub.s32 0, %v60
    %v62 = vrot.slane %v23, %v61
    %v63 = vsub.f32 %v27, %v62
    %v64 = vsub.f32 %v32, %v62
    %v65 = vsub.f32 %v37, %v62
    %v66 = vsub.f32 %v42, %v62
    %v67 = vsub.f32 %v47, %v62
    %v68 = vsub.f32 %v52, %v62
    %v69 = vsub.f32 %v57, %v62
    %v70 = vmul.f32 %v63, %v63
    %v71 = vmul.f32 %v64, %v64
    %v72 = vmul.f32 %v65, %v65
    %v73 = vmul.f32 %v66, %v66
    %v74 = vmul.f32 %v67, %v67
    %v75 = vmul.f32 %v68, %v68
    %v76 = vmul.f32 %v69, %v69
    %77 = vset.pattern.permute.xlu0 1
    %78 = vperm.xlu0 %77, %v16
    %v79 = vpop.permute.xlu0 %78
    %81 = vset.pattern.permute.xlu0 1
    %82 = vperm.xlu0 %81, %v17
    %v83 = vpop.permute.xlu0 %82
    %85 = vset.pattern.permute.xlu0 1
    %86 = vperm.xlu0 %85, %v18
    %v87 = vpop.permute.xlu0 %86
    %89 = vset.pattern.permute.xlu0 1
    %90 = vperm.xlu0 %89, %v19
    %v91 = vpop.permute.xlu0 %90
    %93 = vset.pattern.permute.xlu0 1
    %94 = vperm.xlu0 %93, %v20
    %v95 = vpop.permute.xlu0 %94
    %97 = vset.pattern.permute.xlu0 1
    %98 = vperm.xlu0 %97, %v21
    %v99 = vpop.permute.xlu0 %98
    %101 = vset.pattern.permute.xlu0 1
    %102 = vperm.xlu0 %101, %v22
    %v103 = vpop.permute.xlu0 %102
    %v105 = vlaneseq
    %v106 = vshrl.u32 %v105, 7
    %v107 = vsub.s32 1, %v106
    %v108 = vrot.slane %v23, %v107
    %v109 = vsub.f32 %v79, %v108
    %v110 = vsub.f32 %v83, %v108
    %v111 = vsub.f32 %v87, %v108
    %v112 = vsub.f32 %v91, %v108
    %v113 = vsub.f32 %v95, %v108
    %v114 = vsub.f32 %v99, %v108
    %v115 = vsub.f32 %v103, %v108
    %v116 = vmul.f32 %v109, %v109
    %v117 = vmul.f32 %v110, %v110
    %v118 = vmul.f32 %v111, %v111
    %v119 = vmul.f32 %v112, %v112
    %v120 = vmul.f32 %v113, %v113
    %v121 = vmul.f32 %v114, %v114
    %v122 = vmul.f32 %v115, %v115
    %v123 = vadd.f32 %v70, %v116
    %v124 = vadd.f32 %v71, %v117
    %v125 = vadd.f32 %v72, %v118
    %v126 = vadd.f32 %v73, %v119
    %v127 = vadd.f32 %v74, %v120
    %v128 = vadd.f32 %v75, %v121
    %v129 = vadd.f32 %v76, %v122
    %s130 = sld [smem:[#allocation2]]
    %s131 = ssub.f32 0.0, %s130
    %v132 = vstv %s131
    %v133 = vmul.f32 %v132, %v123
    %v134 = vmul.f32 %v132, %v124
    %v135 = vmul.f32 %v132, %v125
    %v136 = vmul.f32 %v132, %v126
    %v137 = vmul.f32 %v132, %v127
    %v138 = vmul.f32 %v132, %v128
    %v139 = vmul.f32 %v132, %v129
    %v140 = vmul.f32 %v133, 1.442695
    %v141 = vpow.pop %v140
    %v142 = vmul.f32 %v134, 1.442695
    %v143 = vpow.pop %v142
    %v144 = vmul.f32 %v135, 1.442695
    %v145 = vpow.pop %v144
    %v146 = vmul.f32 %v136, 1.442695
    %v147 = vpow.pop %v146
    %v148 = vmul.f32 %v137, 1.442695
    %v149 = vpow.pop %v148
    %v150 = vmul.f32 %v138, 1.442695
    %v151 = vpow.pop %v150
    %v152 = vmul.f32 %v139, 1.442695
    %v153 = vpow.pop %v152
    %vm154 = vcmask 408576
    %155 = vst.msk [vmem:[#allocation3] sm:$0xff] %vm154, %v141
    %156 = vst.msk [vmem:[#allocation3 + $0x8] sm:$0xff] %vm154, %v143
    %157 = vst.msk [vmem:[#allocation3 + $0x10] sm:$0xff] %vm154, %v145
    %158 = vst.msk [vmem:[#allocation3 + $0x18] sm:$0xff] %vm154, %v147
    %159 = vst.msk [vmem:[#allocation3 + $0x20] sm:$0xff] %vm154, %v149
    %160 = vst.msk [vmem:[#allocation3 + $0x28] sm:$0xff] %vm154, %v151
    %vm161 = vcmask 402432
    %162 = vst.msk [vmem:[#allocation3 + $0x30] sm:$0x3] %vm161, %v153
    // Predicated region
    $region14: #{tpu_custom_call.1} parent=1 // pred_check
      _
    $region15: #{tpu_custom_call.1} parent=1 // pred_check_branch
      %164 = sbr.rel (0) target = $region17
    $region16: #{tpu_custom_call.1} parent=1 // pred_region
      %s166 = ssub.s32 896, 896
      %167 = vsyncadd [#allocation4], %s166
      %s168 = sshll.u32 [#allocation3], 4
      %s169 = int_to_ptr.vmem [resolvable:$true] %s168
      %174 = dma.vmem_to_hbm [thread:$0]  %s169, 896, %s3, [#allocation4], 128, 128, 8
    $region17: #{tpu_custom_call.1} parent=1 // pred_fallthru
      _
    // Predicated region
    $region18: #{tpu_custom_call.1} parent=1 // pred_check
      _
    $region19: #{tpu_custom_call.1} parent=1 // pred_check_branch
      %176 = sbr.rel (0) target = $region21
    $region20: #{tpu_custom_call.1} parent=1 // pred_region
      %177 = dma.done [#allocation4], 896
    $region21: #{tpu_custom_call.1} parent=1 // pred_fallthru
      _
    %178 = vsyncpa [#allocation4], 1

</llo_original>
